<compile_context>
chip_gen: v7x
topology: tpu7x:2x2x1
jax: 0.10.0
libtpu: 0.0.40
codegen_flags: <defaults>
</compile_context>

<pallas_src>
import functools

import numpy as np
import jax
import jax.numpy as jnp
from jax.experimental import pallas as pl
from jax.experimental.pallas import tpu as pltpu


def _round_up(x, mult):
    return ((x + mult - 1) // mult) * mult


# ----------------------------------------------------------------------------
# Pallas kernel: sigmoid of objectness logits + transposed pairwise squared L2
# distance between predicted box centers and gt box centers.
# ----------------------------------------------------------------------------
def _matcher_kernel(pred_ref, gt_ref, score_ref, dist_ref):
    # pred_ref:  (3, TILE_N)       row0 = objectness logit, row1 = cx, row2 = cy
    # gt_ref:    (M_PAD8, 2)       gt centers; padded rows are a 1e20 sentinel
    # score_ref: (1, TILE_N)       sigmoid(logits)              (lane-dense store)
    # dist_ref:  (M_PAD8, TILE_N)  squared center distance      (lane-dense store)
    pred = pred_ref[...]
    obj = pred[0:1, :]                      # (1, TILE_N)
    x = pred[1:2, :]
    y = pred[2:3, :]
    # Exact sigmoid: EUP exp + exact divide (score may feed losses/thresholds).
    score_ref[...] = 1.0 / (1.0 + jnp.exp(-obj))

    gt = gt_ref[...]                        # (M_PAD8, 2)
    gx = gt[:, 0:1]                         # (M_PAD8, 1)
    gy = gt[:, 1:2]
    dx = gx - x                             # (M_PAD8, TILE_N) VPU broadcast
    dy = gy - y
    # No masking here: padded gt rows carry a 1e20 sentinel (-> dist >= 1e30),
    # padded proposal columns are masked on the wrapper side before matching.
    dist_ref[...] = dx * dx + dy * dy


def _pick_tile_n(n, m_pad):
    n_pad0 = _round_up(n, 128)
    if n_pad0 <= 128:
        tile_n = 128
    else:
        # >= 2 grid steps so the "parallel" axis can shard across v7x's 2 TCs.
        tile_n = min(2048, _round_up(-(-n_pad0 // 2), 128))

    # Double-buffered VMEM for all tiles must stay well under v5e's 16 MiB
    # default scoped limit (also leaves headroom on v7x's 64 MiB physical).
    def vmem_bytes(t):
        return 2 * 4 * (3 * t + m_pad * 2 + t + m_pad * t)

    budget = 12 * 1024 * 1024
    while tile_n > 128 and vmem_bytes(tile_n) > budget:
        tile_n = max(128, _round_up(tile_n // 2, 128))
    return tile_n


def matcher_compute(is_object, boxes, gt_boxes, num_proposals):
    """Run the matcher kernel.

    is_object: (L, B, NQ, 1) float
    boxes:     (L, B, NQ, 4) float (cx, cy, w, h)
    gt_boxes:  (M, 4) float (cx, cy, w, h)
    num_proposals: python int N (N <= NQ), must be > 0

    Returns (score_pad, dist_pad):
      score_pad: (1, N_pad) f32, valid in [:, :N]
      dist_pad:  (M_pad8, N_pad) f32; rows >= M are >= 1e30 (gt sentinel),
                 columns >= N must be masked by the caller before use.
    """
    L, B, NQ, _ = is_object.shape
    n = int(num_proposals)
    m = int(gt_boxes.shape[0])
    assert n > 0, "matcher_compute requires at least one proposal"

    m_pad = _round_up(max(m, 1), 8)
    tile_n = _pick_tile_n(n, m_pad)
    n_tiles = pl.cdiv(n, tile_n)
    n_pad = n_tiles * tile_n

    # (3, N_pad) lane-dense pred slab: logits + centers, padded lanes = 0.
    obj = is_object[L - 1, 0, :n, 0].astype(jnp.float32)
    cxy = boxes[L - 1, 0, :n, :2].astype(jnp.float32)
    pred = jnp.zeros((3, n_pad), jnp.float32)
    pred = pred.at[0, :n].set(obj)
    pred = pred.at[1, :n].set(cxy[:, 0])
    pred = pred.at[2, :n].set(cxy[:, 1])

    # (M_pad8, 2) gt-center slab; padded rows = 1e20 so their dist row -> inf.
    gt = jnp.full((m_pad, 2), 1e20, jnp.float32)
    gt = gt.at[:m, :].set(gt_boxes[:, :2].astype(jnp.float32))

    score_pad, dist_pad = pl.pallas_call(
        _matcher_kernel,
        out_shape=(
            jax.ShapeDtypeStruct((1, n_pad), jnp.float32),
            jax.ShapeDtypeStruct((m_pad, n_pad), jnp.float32),
        ),
        grid=(n_tiles,),
        in_specs=[
            pl.BlockSpec((3, tile_n), lambda i: (0, i)),
            pl.BlockSpec((m_pad, 2), lambda i: (0, 0)),
        ],
        out_specs=(
            pl.BlockSpec((1, tile_n), lambda i: (0, i)),
            pl.BlockSpec((m_pad, tile_n), lambda i: (0, i)),
        ),
        compiler_params=pltpu.CompilerParams(
            dimension_semantics=("parallel",)),
    )(pred, gt)
    return score_pad, dist_pad


# ----------------------------------------------------------------------------
# On-device greedy matching (replaces argsort + host Python loop).
# ----------------------------------------------------------------------------
def _greedy_assign(dist, gt_idx_init, row_mask, col_mask, n_iter):
    """min(N, M) steps of global argmin + row/col masking (== greedy-by-sorted-order)."""
    m_pad, n_pad = dist.shape
    inf = jnp.float32(jnp.inf)
    d0 = jnp.where(row_mask[:, None] | col_mask[None, :], inf, dist)
    if n_iter <= 0:
        return gt_idx_init

    row_ids = jax.lax.broadcasted_iota(jnp.int32, (m_pad, 1), 0)
    col_ids = jax.lax.broadcasted_iota(jnp.int32, (1, n_pad), 1)
    col_vec = jnp.arange(n_pad, dtype=jnp.int32)

    def body(_, carry):
        d, gi = carry
        flat = jnp.argmin(d.reshape(-1)).astype(jnp.int32)
        i_gt = flat // n_pad
        j_pr = flat - i_gt * n_pad
        ok = jnp.min(d) < jnp.float32(1e30)      # anything assignable left?
        gi = jnp.where(ok & (col_vec == j_pr), i_gt, gi)
        kill = (row_ids == i_gt) | (col_ids == j_pr)
        d = jnp.where(ok & kill, inf, d)
        return d, gi

    _, gt_idx = jax.lax.fori_loop(0, n_iter, body, (d0, gt_idx_init))
    return gt_idx


@functools.partial(jax.jit, static_argnames=("num_proposals",))
def _matcher_device(is_object, boxes, gt_boxes, gt_idx_init,
                    row_assigned, col_assigned, *, num_proposals):
    n = int(num_proposals)
    m = int(gt_boxes.shape[0])
    score_pad, dist_pad = matcher_compute(is_object, boxes, gt_boxes, n)
    m_pad, n_pad = dist_pad.shape
    # Seed masks (padded rows / columns are always masked).
    row_mask = jnp.ones((m_pad,), jnp.bool_).at[:m].set(row_assigned)
    col_mask = jnp.ones((n_pad,), jnp.bool_).at[:n].set(col_assigned)
    gt_idx_pad = jnp.full((n_pad,), -1, jnp.int32).at[:n].set(gt_idx_init)
    gt_idx = _greedy_assign(dist_pad, gt_idx_pad, row_mask, col_mask, min(n, m))
    return score_pad[0, :n], gt_idx[:n]


# ----------------------------------------------------------------------------
# SimpleMatcher equivalent.
# ----------------------------------------------------------------------------
def simple_matcher(track_gt_idx, track_obj_idx, gt_obj_ids, gt_boxes,
                   out_is_object, out_boxes):
    """Mirrors SimpleMatcher.__call__ on the 'prevnew' queries.

    Returns (gt_idx, obj_idx, score) numpy arrays for the N proposals.
    """
    n = int(np.asarray(track_gt_idx).shape[0])
    m = int(gt_boxes.shape[0])
    gt_obj_ids_np = np.asarray(gt_obj_ids)
    track_gt_idx_np = np.asarray(track_gt_idx)
    obj_idx = np.asarray(track_obj_idx).astype(np.int64).copy()

    if n == 0:
        return np.zeros((0,), np.int32), obj_idx, np.zeros((0,), np.float32)

    # Proposals that already carry an assignment from tracking.
    col_assigned = (track_gt_idx_np >= 0).copy()

    # Re-associate by object id.
    gt_idx = np.full((n,), -1, np.int32)
    if m > 0:
        ii, jj = np.where(obj_idx[:, None] == gt_obj_ids_np[None, :])
    else:
        ii = jj = np.zeros((0,), np.int64)
    gt_idx[ii] = jj
    col_assigned[ii] = True
    row_assigned = np.zeros((m,), bool)
    row_assigned[jj] = True

    # ---- device hot path: Pallas kernel + on-device greedy matching ----
    score_dev, gt_idx_dev = _matcher_device(
        out_is_object, out_boxes, gt_boxes,
        jnp.asarray(gt_idx), jnp.asarray(row_assigned), jnp.asarray(col_assigned),
        num_proposals=n)

    gt_idx = np.asarray(gt_idx_dev).astype(np.int32)
    score = np.asarray(score_dev).astype(np.float32)

    newly = gt_idx >= 0
    if m > 0 and newly.any():
        obj_idx[newly] = gt_obj_ids_np.astype(np.int64)[gt_idx[newly]]
    return gt_idx, obj_idx, score


# ----------------------------------------------------------------------------
# Criterion equivalent.
# ----------------------------------------------------------------------------
class Criterion:
    def __init__(self):
        self.losses = {"is_object": 1, "boxes": 1, "giou": 1}
        # TODO(synk): loss_fn_getter / TrackInstances loss terms are not defined
        # in the provided module; only the matcher hot path is implemented.

    def forward(self, outputs, gt_instances):
        # Exact semantics of the PyTorch forward: returns an empty dict.
        dict_losses = {}
        return dict_losses

    def forward_intra_frame(self, track, output, gt_instance):
        gt_idx, obj_idx, score = simple_matcher(
            track["gt_idx"], track["obj_idx"],
            gt_instance["obj_ids"], gt_instance["boxes"],
            output["is_object"], output["boxes"],
        )
        matched = {"gt_idx": gt_idx, "obj_idx": obj_idx, "score": score}
        dict_losses = {}  # TODO(synk): individual loss fns not present in source
        return matched, dict_losses


# ----------------------------------------------------------------------------
# Demo / self-test
# ----------------------------------------------------------------------------
if __name__ == "__main__":
    key = jax.random.PRNGKey(0)
    L, B, NQ, N, M = 3, 1, 16, 8, 4   # decoder layers, batch, queries, proposals, gt

    k1, k2, k3 = jax.random.split(key, 3)
    outputs = {
        "is_object": jax.random.normal(k1, (L, B, NQ, 1), dtype=jnp.float32),
        "boxes": jax.random.uniform(k2, (L, B, NQ, 4), dtype=jnp.float32),
    }
    gt_instance = {
        "obj_ids": jnp.array([10, 11, 12, 13], dtype=jnp.int32),
        "boxes": jax.random.uniform(k3, (M, 4), dtype=jnp.float32),
    }
    # two proposals already track objects 10 and 13, rest are new queries
    track = {
        "gt_idx": np.array([0, -1, -1, 3, -1, -1, -1, -1], dtype=np.int32),
        "obj_idx": np.array([10, -1, -1, 13, -1, -1, -1, -1], dtype=np.int64),
    }

    crit = Criterion()

    # exact forward() semantics
    assert crit.forward(outputs, gt_instance) == {}

    # ---- kernel numerics check against plain numpy ----
    score_pad, dist_pad = matcher_compute(
        outputs["is_object"], outputs["boxes"], gt_instance["boxes"], N)
    jax.block_until_ready((score_pad, dist_pad))

    obj_np = np.asarray(outputs["is_object"])[-1, 0, :N, 0]
    xy_np = np.asarray(outputs["boxes"])[-1, 0, :N, :2]
    gt_np = np.asarray(gt_instance["boxes"])[:, :2]
    ref_score = 1.0 / (1.0 + np.exp(-obj_np))
    ref_dist = ((xy_np[:, None, :] - gt_np[None, :, :]) ** 2).sum(-1)  # (N, M)

    score_np = np.asarray(score_pad)
    dist_np = np.asarray(dist_pad)                                     # (M_pad8, N_pad)
    np.testing.assert_allclose(score_np[0, :N], ref_score, rtol=1e-4, atol=1e-5)
    np.testing.assert_allclose(dist_np[:M, :N], ref_dist.T, rtol=1e-5, atol=1e-6)
    # padded gt rows carry the 1e20 sentinel -> huge distances
    assert np.all(dist_np[M:, :] >= 1e30)

    # ---- matcher end-to-end vs a numpy reference of the PyTorch greedy ----
    matched, _ = crit.forward_intra_frame(track, outputs, gt_instance)

    ref_gt_idx = np.full((N,), -1, np.int32)
    ref_obj_idx = track["obj_idx"].copy()
    assigned_pr = {int(i) for i in np.where(track["gt_idx"] >= 0)[0]}
    ii, jj = np.where(track["obj_idx"][:, None] ==
                      np.asarray(gt_instance["obj_ids"])[None, :])
    ref_gt_idx[ii] = jj
    assigned_gt = {int(j) for j in jj}
    assigned_pr |= {int(i) for i in ii}
    for flat in np.argsort(ref_dist.reshape(-1), kind="stable"):
        i, j = divmod(int(flat), M)
        if j in assigned_gt or i in assigned_pr:
            continue
        ref_gt_idx[i] = j
        ref_obj_idx[i] = int(np.asarray(gt_instance["obj_ids"])[j])
        assigned_gt.add(j)
        assigned_pr.add(i)

    # previously tracked proposals keep their gt via object-id re-association
    assert int(matched["gt_idx"][0]) == 0
    assert int(matched["gt_idx"][3]) == 3
    # N >= M, so every gt must end up assigned to exactly one proposal
    assigned = sorted(int(j) for j in matched["gt_idx"] if j >= 0)
    assert assigned == list(range(M)), assigned
    # exact agreement with the reference greedy matching
    assert np.array_equal(matched["gt_idx"], ref_gt_idx), (matched["gt_idx"], ref_gt_idx)
    assert np.array_equal(matched["obj_idx"], ref_obj_idx), (matched["obj_idx"], ref_obj_idx)
    np.testing.assert_allclose(matched["score"], ref_score, rtol=1e-4, atol=1e-5)

    print("KERNEL_OK")
</pallas_src>

<mosaic_0001>
module attributes {stable_mosaic.version = 11 : i64} {
  func.func @_matcher_kernel(%arg0: i32, %arg1: memref<3x128xf32, #tpu.memory_space<vmem>>, %arg2: memref<8x2xf32, #tpu.memory_space<vmem>>, %arg3: memref<1x128xf32, #tpu.memory_space<vmem>>, %arg4: memref<8x128xf32, #tpu.memory_space<vmem>>) attributes {dimension_semantics = [#tpu.dimension_semantics<parallel>], iteration_bounds = array<i64: 1>, scalar_prefetch = 0 : i64, scratch_operands = 0 : i64, tpu.core_type = #tpu.core_type<tc>, window_params = [{transform_indices = @transform_0, window_bounds = array<i64: 3, 128>}, {pipeline_mode = #tpu.pipeline_mode<synchronous>, transform_indices = @transform_1, window_bounds = array<i64: 8, 2>}, {transform_indices = @transform_2, window_bounds = array<i64: 1, 128>}, {transform_indices = @transform_3, window_bounds = array<i64: 8, 128>}]} {
    %c0 = arith.constant 0 : index
    %c0_0 = arith.constant 0 : index
    %0 = vector.load %arg1[%c0, %c0_0] : memref<3x128xf32, #tpu.memory_space<vmem>>, vector<3x128xf32>
    %1 = vector.extract_strided_slice %0 {offsets = [0, 0], sizes = [1, 128], strides = [1, 1]} : vector<3x128xf32> to vector<1x128xf32>
    %2 = vector.extract_strided_slice %0 {offsets = [1, 0], sizes = [1, 128], strides = [1, 1]} : vector<3x128xf32> to vector<1x128xf32>
    %3 = vector.extract_strided_slice %0 {offsets = [2, 0], sizes = [1, 128], strides = [1, 1]} : vector<3x128xf32> to vector<1x128xf32>
    %cst = arith.constant 0.000000e+00 : f32
    %4 = vector.broadcast %cst : f32 to vector<1x128xf32>
    %5 = arith.subf %4, %1 : vector<1x128xf32>
    %6 = math.exp %5 : vector<1x128xf32>
    %cst_1 = arith.constant 1.000000e+00 : f32
    %7 = vector.broadcast %cst_1 : f32 to vector<1x128xf32>
    %8 = arith.addf %7, %6 : vector<1x128xf32>
    %cst_2 = arith.constant 1.000000e+00 : f32
    %9 = vector.broadcast %cst_2 : f32 to vector<1x128xf32>
    %10 = arith.divf %9, %8 : vector<1x128xf32>
    %c0_3 = arith.constant 0 : index
    %c0_4 = arith.constant 0 : index
    %11 = vector.load %arg3[%c0_3, %c0_4] : memref<1x128xf32, #tpu.memory_space<vmem>>, vector<1x128xf32>
    tpu.vector_store %arg3[%c0_3, %c0_4], %10 {strides = array<i32>} : memref<1x128xf32, #tpu.memory_space<vmem>>, vector<1x128xf32>,
    %c0_5 = arith.constant 0 : index
    %c0_6 = arith.constant 0 : index
    %12 = vector.load %arg2[%c0_5, %c0_6] : memref<8x2xf32, #tpu.memory_space<vmem>>, vector<8x2xf32>
    %13 = vector.extract_strided_slice %12 {offsets = [0, 0], sizes = [8, 1], strides = [1, 1]} : vector<8x2xf32> to vector<8x1xf32>
    %14 = vector.extract_strided_slice %12 {offsets = [0, 1], sizes = [8, 1], strides = [1, 1]} : vector<8x2xf32> to vector<8x1xf32>
    %15 = vector.broadcast %13 : vector<8x1xf32> to vector<8x128xf32>
    %16 = vector.broadcast %2 : vector<1x128xf32> to vector<8x128xf32>
    %17 = arith.subf %15, %16 : vector<8x128xf32>
    %18 = vector.broadcast %14 : vector<8x1xf32> to vector<8x128xf32>
    %19 = vector.broadcast %3 : vector<1x128xf32> to vector<8x128xf32>
    %20 = arith.subf %18, %19 : vector<8x128xf32>
    %21 = arith.mulf %17, %17 : vector<8x128xf32>
    %22 = arith.mulf %20, %20 : vector<8x128xf32>
    %23 = arith.addf %21, %22 : vector<8x128xf32>
    %c0_7 = arith.constant 0 : index
    %c0_8 = arith.constant 0 : index
    %24 = vector.load %arg4[%c0_7, %c0_8] : memref<8x128xf32, #tpu.memory_space<vmem>>, vector<8x128xf32>
    tpu.vector_store %arg4[%c0_7, %c0_8], %23 {strides = array<i32>} : memref<8x128xf32, #tpu.memory_space<vmem>>, vector<8x128xf32>,
    return
  }
  func.func @transform_0(%arg0: i32) -> (i32, i32) {
    %c0_i32 = arith.constant 0 : i32
    %c0_i32_0 = arith.constant 0 : i32
    return %c0_i32, %arg0 : i32, i32
  }
  func.func @transform_1(%arg0: i32) -> (i32, i32) {
    %c0_i32 = arith.constant 0 : i32
    %c0_i32_0 = arith.constant 0 : i32
    %c0_i32_1 = arith.constant 0 : i32
    return %c0_i32, %c0_i32_0 : i32, i32
  }
  func.func @transform_2(%arg0: i32) -> (i32, i32) {
    %c0_i32 = arith.constant 0 : i32
    %c0_i32_0 = arith.constant 0 : i32
    return %c0_i32, %arg0 : i32, i32
  }
  func.func @transform_3(%arg0: i32) -> (i32, i32) {
    %c0_i32 = arith.constant 0 : i32
    %c0_i32_0 = arith.constant 0 : i32
    return %c0_i32, %arg0 : i32, i32
  }
}

</mosaic_0001>

<llo_original>
// kernel: tpu_custom_call.1
$region0: #{tpu_custom_call.1}
  #allocation0 [shape = 'u32[]', space=smem, size = 0x4, offset = 0x4, fixed_abs, tag = 'smem constant byte address 0x4 - core index']
  #allocation1 [shape = 'u32[144,128]{1,0:T(1,128)}', space=vmem, size = 0x12000, scoped, tag = 'internal scratch']
  %s0 = inlined_call_operand.vmem [shape: f32[3,128], index: 0, kind: input, shape index: {}]
  %s1 = inlined_call_operand.vmem [shape: f32[8,2], index: 1, kind: input, shape index: {}]
  %s2 = inlined_call_operand.hbm [shape: f32[1,128], index: 2, kind: output, shape index: {0}]
  %s3 = inlined_call_operand.hbm [shape: f32[8,128], index: 3, kind: output, shape index: {1}]
  %4 = xla_tuple %s2, %s3
  %s5 = sld [smem:[#allocation0]]
  $region26: #{tpu_custom_call.1} parent=0
    _
  %s7 = ssub.s32 1, %s5
  %s8 = scalar_select 0, %s7, %s5
  $region1: #{tpu_custom_call.1} parent=0
    #allocation2 [shape = 'u8[512]{0}', space=vmem, size = 0x400, scoped, tag = 'output window, operand 0, single buffered']
    #allocation3 [shape = 's32[1]{0}', space=sflag, size = 0x4, scoped, tag = 'scoped memory for tpu_custom_call.1']
    #allocation4 [shape = 'u8[4096]{0}', space=vmem, size = 0x1000, scoped, tag = 'output window, operand 1, single buffered']
    #allocation5 [shape = 's32[1]{0}', space=sflag, size = 0x4, scoped, tag = 'scoped memory for tpu_custom_call.1']
    %9 = vsyncpa [#allocation3], 0
    %10 = vsyncpa [#allocation5], 0
    // Predicated region
    $region2: #{tpu_custom_call.1} parent=1 // pred_check
      _
    $region3: #{tpu_custom_call.1} parent=1 // pred_check_branch
      %12 = sbr.rel (0) target = $region5
    $region4: #{tpu_custom_call.1} parent=1 // pred_region
      _
    $region5: #{tpu_custom_call.1} parent=1 // pred_fallthru
      _
    // Predicated region
    $region6: #{tpu_custom_call.1} parent=1 // pred_check
      _
    $region7: #{tpu_custom_call.1} parent=1 // pred_check_branch
      %14 = sbr.rel (0) target = $region9
    $region8: #{tpu_custom_call.1} parent=1 // pred_region
      _
    $region9: #{tpu_custom_call.1} parent=1 // pred_fallthru
      _
    %v15 = vld [vmem:[%s0] sm:$0x7]
    %v16 = vsub.f32 0.0, %v15
    %v17 = vmul.f32 %v16, 1.442695
    %v18 = vpow.pop %v17
    %v19 = vadd.f32 %v18, 1.0
    %v20 = vrcp.pop %v19
    %v21 = vmul.f32 1.0, %v20
    %22 = vst [vmem:[#allocation2] sm:$0x1] %v21
    %v23 = vld [vmem:[%s1] sm:$0xff]
    %25 = vset.pattern.permute.xlu0 0
    %26 = vperm.xlu0 %25, %v23
    %v27 = vpop.permute.xlu0 %26
    %v29 = vlaneseq
    %v30 = vshrl.u32 %v29, 7
    %v31 = vsub.s32 1, %v30
    %v32 = vrot.slane %v15, %v31
    %v33 = vsub.f32 %v27, %v32
    %34 = vset.pattern.permute.xlu0 1
    %35 = vperm.xlu0 %34, %v23
    %v36 = vpop.permute.xlu0 %35
    %v38 = vlaneseq
    %v39 = vshrl.u32 %v38, 7
    %v40 = vsub.s32 2, %v39
    %v41 = vrot.slane %v15, %v40
    %v42 = vsub.f32 %v36, %v41
    %v43 = vmul.f32 %v33, %v33
    %v44 = vmul.f32 %v42, %v42
    %v45 = vadd.f32 %v43, %v44
    %46 = vst [vmem:[#allocation4] sm:$0xff] %v45
    // Predicated region
    $region10: #{tpu_custom_call.1} parent=1 // pred_check
      _
    $region11: #{tpu_custom_call.1} parent=1 // pred_check_branch
      %48 = sbr.rel (0) target = $region13
    $region12: #{tpu_custom_call.1} parent=1 // pred_region
      %s50 = ssub.s32 16, 16
      %51 = vsyncadd [#allocation3], %s50
      %s53 = sshll.u32 [#allocation2], 4
      %s54 = int_to_ptr.vmem [resolvable:$true] %s53
      %56 = dma.vmem_to_hbm [thread:$0]  %s54, 16, %s2, [#allocation3]
    $region13: #{tpu_custom_call.1} parent=1 // pred_fallthru
      _
    // Predicated region
    $region14: #{tpu_custom_call.1} parent=1 // pred_check
      _
    $region15: #{tpu_custom_call.1} parent=1 // pred_check_branch
      %58 = sbr.rel (0) target = $region17
    $region16: #{tpu_custom_call.1} parent=1 // pred_region
      %s60 = ssub.s32 128, 128
      %61 = vsyncadd [#allocation5], %s60
      %s63 = sshll.u32 [#allocation4], 4
      %s64 = int_to_ptr.vmem [resolvable:$true] %s63
      %66 = dma.vmem_to_hbm [thread:$0]  %s64, 128, %s3, [#allocation5]
    $region17: #{tpu_custom_call.1} parent=1 // pred_fallthru
      _
    // Predicated region
    $region18: #{tpu_custom_call.1} parent=1 // pred_check
      _
    $region19: #{tpu_custom_call.1} parent=1 // pred_check_branch
      %68 = sbr.rel (0) target = $region21
    $region20: #{tpu_custom_call.1} parent=1 // pred_region
      %69 = dma.done [#allocation3], 16
    $region21: #{tpu_custom_call.1} parent=1 // pred_fallthru
      _
    // Predicated region
    $region22: #{tpu_custom_call.1} parent=1 // pred_check
      _
    $region23: #{tpu_custom_call.1} parent=1 // pred_check_branch
      %71 = sbr.rel (0) target = $region25
    $region24: #{tpu_custom_call.1} parent=1 // pred_region
      %72 = dma.done [#allocation5], 128
    $region25: #{tpu_custom_call.1} parent=1 // pred_fallthru
      _
    %73 = vsyncpa [#allocation3], 1
    %74 = vsyncpa [#allocation5], 1

</llo_original>
